<compile_context>
chip_gen: v5e
topology: v5e:2x2
jax: 0.10.0
libtpu: 0.0.40
codegen_flags: <defaults>
</compile_context>

<pallas_src>
import functools

import jax
import jax.numpy as jnp
from jax.experimental import pallas as pl
from jax.experimental.pallas import tpu as pltpu


def _round_up(x: int, n: int) -> int:
    return ((x + n - 1) // n) * n


def _vmem_capacity_bytes() -> int:
    try:
        return int(pltpu.get_tpu_info().vmem_capacity_bytes)
    except Exception:
        return 64 << 20  # conservative fallback: v7x per-TensorCore VMEM


def _pq_embedding_split_kernel(tok_codes_ref, cb_ref, out_ref):
    """sub_dim lane-aligned path: m small matmuls into lane-aligned output bands.

    tok_codes_ref : (block_t, m)          int32  per-token PQ codes (pre-gathered)
    cb_ref        : (m, k, sub_dim)       float  codebooks (grid-invariant)
    out_ref       : (block_t, m*sub_dim)  float  output embedding rows
    """
    codes = tok_codes_ref[...]                                    # (T, m) int32
    m, k, sub_dim = cb_ref.shape
    lane = jax.lax.broadcasted_iota(jnp.int32, (1, k), 1)         # (1, k), broadcast in compare
    for i in range(m):                                            # m is small & static
        oh = (codes[:, i:i + 1] == lane).astype(cb_ref.dtype)     # (T, k), exact 0/1
        piece = jnp.dot(oh, cb_ref[i], preferred_element_type=jnp.float32)
        out_ref[:, i * sub_dim:(i + 1) * sub_dim] = piece.astype(out_ref.dtype)


def _pq_embedding_fused_kernel(tok_codes_ref, w_ref, out_ref):
    """Fused block-diagonal path (sub_dim < 128): one lane-dense matmul.

    tok_codes_ref : (block_t, m)      int32  per-token PQ codes (pre-gathered)
    w_ref         : (m*k, D_pad)      float  block-diagonal codebook (grid-invariant)
    out_ref       : (block_t, D_pad)  float  output embedding rows (padded lanes)
    """
    codes = tok_codes_ref[...]                                    # (T, m) int32
    _, m = codes.shape
    mk = w_ref.shape[0]
    k = mk // m

    # Combined one-hot over the flattened (m*k) index: each subvector's code is shifted
    # into its own disjoint band [i*k, (i+1)*k).  (1, MK) iota broadcasts in the compare,
    # compares accumulate in int32, single cast to the matmul dtype at the end.
    col = jax.lax.broadcasted_iota(jnp.int32, (1, mk), 1)         # (1, MK)
    oh = (col == codes[:, 0:1]).astype(jnp.int32)                 # band 0 (offset 0)
    for i in range(1, m):
        oh = oh + (col == (codes[:, i:i + 1] + i * k)).astype(jnp.int32)

    out = jnp.dot(oh.astype(w_ref.dtype), w_ref[...],
                  preferred_element_type=jnp.float32)
    out_ref[...] = out.astype(out_ref.dtype)


@functools.partial(jax.jit, static_argnames=("block_t",))
def pq_embedding(input_ids, codes, codebooks, *, block_t=512):
    """Forward pass of PQEmbedding: returns embeddings[input_ids]."""
    orig_shape = input_ids.shape
    ids_flat = input_ids.reshape(-1).astype(jnp.int32)

    m, k, sub_dim = codebooks.shape
    D = m * sub_dim
    out_dtype = codebooks.dtype
    itemsize = jnp.dtype(out_dtype).itemsize

    # --- stage 1: gather per-token PQ codes with plain XLA (gather before cast) -------
    tok_codes = codes[ids_flat].astype(jnp.int32)                 # (T, m) int32
    tok_codes = jnp.clip(tok_codes, 0, k - 1)                     # defend against OOB codes

    t_total = tok_codes.shape[0]

    # Tile size: large tiles amortize per-step overhead; clamp for tiny inputs so we
    # don't pad to a huge block, and keep >= 2 grid steps when possible (v7x has 2 TCs).
    block_t_eff = max(128, min(block_t, _round_up(t_total, 128)))
    while block_t_eff >= 512 and pl.cdiv(t_total, block_t_eff) < 2:
        block_t_eff //= 2
    t_pad = _round_up(t_total, block_t_eff)
    if t_pad != t_total:
        tok_codes = jnp.pad(tok_codes, ((0, t_pad - t_total), (0, 0)))
    grid = (t_pad // block_t_eff,)

    split_path = (sub_dim % 128 == 0)

    if split_path:
        # Per-subvector matmuls: no block-diagonal W needed at all.
        D_pad = D
        table = codebooks
        table_bytes = m * k * sub_dim * itemsize
        table_block = (m, k, sub_dim)
        table_index_map = lambda t: (0, 0, 0)
        kernel = _pq_embedding_split_kernel
        onehot_bytes = block_t_eff * k * (4 + itemsize)
    else:
        # Block-diagonal codebook: W[i*k + j, i*sub_dim + d] = codebooks[i, j, d].
        # In production this should be precomputed once when codebooks change, not per call.
        D_pad = _round_up(D, 128)                                 # lane-dense output writeback
        w = jax.scipy.linalg.block_diag(*[codebooks[i] for i in range(m)])
        if D_pad != D:
            w = jnp.pad(w, ((0, 0), (0, D_pad - D)))
        table = w
        table_bytes = (m * k) * D_pad * itemsize
        table_block = (m * k, D_pad)
        table_index_map = lambda t: (0, 0)
        kernel = _pq_embedding_fused_kernel
        onehot_bytes = block_t_eff * (m * k) * (4 + itemsize)

    # Grid-invariant table: single-buffer when it is large (saves VMEM on v7x's 64 MiB).
    table_bufs = 2
    table_spec_kwargs = {}
    if table_bytes > (4 << 20):
        table_spec_kwargs["pipeline_mode"] = pl.Buffered(1)
        table_bufs = 1

    # VMEM budget: double-buffered codes + output tiles, codebook table, in-kernel
    # one-hot temporaries, plus headroom; capped at 75% of the per-core VMEM capacity.
    vmem_need = (2 * block_t_eff * m * 4
                 + 2 * block_t_eff * D_pad * itemsize
                 + table_bufs * table_bytes
                 + onehot_bytes)
    cap = _vmem_capacity_bytes()
    vmem_limit = int(min(max(vmem_need + (8 << 20), 32 << 20), (cap * 3) // 4))

    out = pl.pallas_call(
        kernel,
        out_shape=jax.ShapeDtypeStruct((t_pad, D_pad), out_dtype),
        grid=grid,
        in_specs=[
            pl.BlockSpec((block_t_eff, m), lambda t: (t, 0)),          # per-token codes tile
            pl.BlockSpec(table_block, table_index_map, **table_spec_kwargs),
        ],
        out_specs=pl.BlockSpec((block_t_eff, D_pad), lambda t: (t, 0)),
        compiler_params=pltpu.CompilerParams(
            dimension_semantics=("parallel",),
            vmem_limit_bytes=vmem_limit),
    )(tok_codes, table)

    out = out[:t_total, :D]
    return out.reshape(*orig_shape, D)


def reference_pq_embedding(input_ids, codes, codebooks):
    """Pure-JAX reference matching the PyTorch module semantics."""
    m, k, sub_dim = codebooks.shape
    N = codes.shape[0]
    gathered = codebooks[jnp.arange(m)[None, :], codes, :]        # (N, m, sub_dim)
    E = gathered.reshape(N, m * sub_dim)                          # (N, D)
    return E[input_ids]


if __name__ == "__main__":
    key = jax.random.PRNGKey(0)

    def run_case(case_key, num_embeddings, embedding_dim, m, k, padding_idx):
        sub_dim = embedding_dim // m
        k_cb, k_codes, k_ids = jax.random.split(case_key, 3)
        codebooks = jax.random.normal(k_cb, (m, k, sub_dim), dtype=jnp.float32)
        codes = jax.random.randint(k_codes, (num_embeddings, m), 0, k, dtype=jnp.int32)
        if padding_idx is not None:
            codes = codes.at[padding_idx].set(0)
        input_ids = jax.random.randint(k_ids, (2, 8), 0, num_embeddings, dtype=jnp.int32)
        input_ids = input_ids.at[0, 0].set(0 if padding_idx is None else padding_idx)

        out = jax.block_until_ready(pq_embedding(input_ids, codes, codebooks))
        ref = reference_pq_embedding(input_ids, codes, codebooks)
        assert out.shape == (2, 8, embedding_dim), out.shape
        assert jnp.allclose(out, ref, atol=1e-5, rtol=1e-5), "mismatch vs reference"

    k1, k2 = jax.random.split(key)
    # Fused block-diagonal path (sub_dim = 8 < 128; exercises lane padding of D=32 -> 128).
    run_case(k1, num_embeddings=64, embedding_dim=32, m=4, k=32, padding_idx=0)
    # Per-subvector matmul path (sub_dim = 128, lane-aligned output bands, no W built).
    run_case(k2, num_embeddings=64, embedding_dim=256, m=2, k=16, padding_idx=0)

    print("KERNEL_OK")
</pallas_src>

<mosaic_0001>
module attributes {stable_mosaic.version = 11 : i64} {
  func.func @_pq_embedding_fused_kernel(%arg0: i32, %arg1: memref<128x4xi32, #tpu.memory_space<vmem>>, %arg2: memref<128x128xf32, #tpu.memory_space<vmem>>, %arg3: memref<128x128xf32, #tpu.memory_space<vmem>>) attributes {dimension_semantics = [#tpu.dimension_semantics<parallel>], iteration_bounds = array<i64: 1>, scalar_prefetch = 0 : i64, scratch_operands = 0 : i64, tpu.core_type = #tpu.core_type<tc>, window_params = [{transform_indices = @transform_0, window_bounds = array<i64: 128, 4>}, {pipeline_mode = #tpu.pipeline_mode<synchronous>, transform_indices = @transform_1, window_bounds = array<i64: 128, 128>}, {transform_indices = @transform_2, window_bounds = array<i64: 128, 128>}]} {
    %c0 = arith.constant 0 : index
    %c0_0 = arith.constant 0 : index
    %0 = vector.load %arg1[%c0, %c0_0] : memref<128x4xi32, #tpu.memory_space<vmem>>, vector<128x4xi32>
    %1 = tpu.iota {dimensions = array<i32: 1>} : vector<1x128xi32>
    %2 = vector.extract_strided_slice %0 {offsets = [0, 0], sizes = [128, 1], strides = [1, 1]} : vector<128x4xi32> to vector<128x1xi32>
    %3 = vector.broadcast %1 : vector<1x128xi32> to vector<128x128xi32>
    %4 = vector.broadcast %2 : vector<128x1xi32> to vector<128x128xi32>
    %5 = arith.cmpi eq, %3, %4 : vector<128x128xi32>
    %6 = arith.extui %5 : vector<128x128xi1> to vector<128x128xi32>
    %7 = vector.extract_strided_slice %0 {offsets = [0, 1], sizes = [128, 1], strides = [1, 1]} : vector<128x4xi32> to vector<128x1xi32>
    %c32_i32 = arith.constant 32 : i32
    %8 = vector.broadcast %c32_i32 : i32 to vector<128x1xi32>
    %9 = arith.addi %7, %8 : vector<128x1xi32>
    %10 = vector.broadcast %1 : vector<1x128xi32> to vector<128x128xi32>
    %11 = vector.broadcast %9 : vector<128x1xi32> to vector<128x128xi32>
    %12 = arith.cmpi eq, %10, %11 : vector<128x128xi32>
    %13 = arith.extui %12 : vector<128x128xi1> to vector<128x128xi32>
    %14 = arith.addi %6, %13 : vector<128x128xi32>
    %15 = vector.extract_strided_slice %0 {offsets = [0, 2], sizes = [128, 1], strides = [1, 1]} : vector<128x4xi32> to vector<128x1xi32>
    %c64_i32 = arith.constant 64 : i32
    %16 = vector.broadcast %c64_i32 : i32 to vector<128x1xi32>
    %17 = arith.addi %15, %16 : vector<128x1xi32>
    %18 = vector.broadcast %1 : vector<1x128xi32> to vector<128x128xi32>
    %19 = vector.broadcast %17 : vector<128x1xi32> to vector<128x128xi32>
    %20 = arith.cmpi eq, %18, %19 : vector<128x128xi32>
    %21 = arith.extui %20 : vector<128x128xi1> to vector<128x128xi32>
    %22 = arith.addi %14, %21 : vector<128x128xi32>
    %23 = vector.extract_strided_slice %0 {offsets = [0, 3], sizes = [128, 1], strides = [1, 1]} : vector<128x4xi32> to vector<128x1xi32>
    %c96_i32 = arith.constant 96 : i32
    %24 = vector.broadcast %c96_i32 : i32 to vector<128x1xi32>
    %25 = arith.addi %23, %24 : vector<128x1xi32>
    %26 = vector.broadcast %1 : vector<1x128xi32> to vector<128x128xi32>
    %27 = vector.broadcast %25 : vector<128x1xi32> to vector<128x128xi32>
    %28 = arith.cmpi eq, %26, %27 : vector<128x128xi32>
    %29 = arith.extui %28 : vector<128x128xi1> to vector<128x128xi32>
    %30 = arith.addi %22, %29 : vector<128x128xi32>
    %31 = arith.sitofp %30 : vector<128x128xi32> to vector<128x128xf32>
    %c0_1 = arith.constant 0 : index
    %c0_2 = arith.constant 0 : index
    %32 = vector.load %arg2[%c0_1, %c0_2] : memref<128x128xf32, #tpu.memory_space<vmem>>, vector<128x128xf32>
    %cst = arith.constant dense<0.000000e+00> : vector<128x128xf32>
    %33 = tpu.matmul %31, %32, %cst {dimension_numbers = #tpu.dot_dimension_numbers<[1], [0], [0], [1], [0, 0, 1, 1], [], []>} : vector<128x128xf32>, vector<128x128xf32>, vector<128x128xf32> -> vector<128x128xf32>
    %c0_3 = arith.constant 0 : index
    %c0_4 = arith.constant 0 : index
    %34 = vector.load %arg3[%c0_3, %c0_4] : memref<128x128xf32, #tpu.memory_space<vmem>>, vector<128x128xf32>
    tpu.vector_store %arg3[%c0_3, %c0_4], %33 {strides = array<i32>} : memref<128x128xf32, #tpu.memory_space<vmem>>, vector<128x128xf32>,
    return
  }
  func.func @transform_0(%arg0: i32) -> (i32, i32) {
    %c0_i32 = arith.constant 0 : i32
    %c0_i32_0 = arith.constant 0 : i32
    return %arg0, %c0_i32 : i32, i32
  }
  func.func @transform_1(%arg0: i32) -> (i32, i32) {
    %c0_i32 = arith.constant 0 : i32
    %c0_i32_0 = arith.constant 0 : i32
    %c0_i32_1 = arith.constant 0 : i32
    return %c0_i32, %c0_i32_0 : i32, i32
  }
  func.func @transform_2(%arg0: i32) -> (i32, i32) {
    %c0_i32 = arith.constant 0 : i32
    %c0_i32_0 = arith.constant 0 : i32
    return %arg0, %c0_i32 : i32, i32
  }
}

</mosaic_0001>

<llo_original>
// kernel: pq_embedding.1
$region0: #{pq_embedding.1}
  #allocation0 [shape = 'u32[]', space=smem, size = 0x4, offset = 0x4, fixed_abs, tag = 'smem constant byte address 0x4 - core index']
  #allocation1 [shape = 'u32[72,128]{1,0:T(1,128)}', space=vmem, size = 0x9000, scoped, tag = 'internal scratch']
  %s0 = inlined_call_operand.vmem [shape: s32[128,4], index: 0, kind: input, shape index: {}]
  %s1 = inlined_call_operand.vmem [shape: f32[128,128], index: 1, kind: input, shape index: {}]
  %s2 = inlined_call_operand.vmem [shape: f32[128,128], index: 2, kind: output, shape index: {}]
  %s3 = sld [smem:[#allocation0]]
  $region18: #{pq_embedding.1} parent=0
    _
  %s5 = ssub.s32 1, %s3
  %s6 = scalar_select 0, %s5, %s3
  // Predicated region
  $region2: #{pq_embedding.1} parent=0 // pred_check
    _
  $region3: #{pq_embedding.1} parent=0 // pred_check_branch
    %8 = sbr.rel (0) target = $region5
  $region4: #{pq_embedding.1} parent=0 // pred_region
    _
  $region5: #{pq_embedding.1} parent=0 // pred_fallthru
    _
  // Predicated region
  $region6: #{pq_embedding.1} parent=0 // pred_check
    _
  $region7: #{pq_embedding.1} parent=0 // pred_check_branch
    %10 = sbr.rel (0) target = $region9
  $region8: #{pq_embedding.1} parent=0 // pred_region
    _
  $region9: #{pq_embedding.1} parent=0 // pred_fallthru
    _
  %v11 = vld [vmem:[%s0] sm:$0xff]
  %v12 = vld [vmem:[%s0 + $0x8] sm:$0xff]
  %v13 = vld [vmem:[%s0 + $0x10] sm:$0xff]
  %v14 = vld [vmem:[%s0 + $0x18] sm:$0xff]
  %v15 = vld [vmem:[%s0 + $0x20] sm:$0xff]
  %v16 = vld [vmem:[%s0 + $0x28] sm:$0xff]
  %v17 = vld [vmem:[%s0 + $0x30] sm:$0xff]
  %v18 = vld [vmem:[%s0 + $0x38] sm:$0xff]
  %v19 = vld [vmem:[%s0 + $0x40] sm:$0xff]
  %v20 = vld [vmem:[%s0 + $0x48] sm:$0xff]
  %v21 = vld [vmem:[%s0 + $0x50] sm:$0xff]
  %v22 = vld [vmem:[%s0 + $0x58] sm:$0xff]
  %v23 = vld [vmem:[%s0 + $0x60] sm:$0xff]
  %v24 = vld [vmem:[%s0 + $0x68] sm:$0xff]
  %v25 = vld [vmem:[%s0 + $0x70] sm:$0xff]
  %v26 = vld [vmem:[%s0 + $0x78] sm:$0xff]
  %v27 = vlaneseq
  %v28 = vand.u32 %v27, 127
  %29 = vset.pattern.permute.xlu0 0
  %30 = vperm.xlu0 %29, %v11
  %v31 = vpop.permute.xlu0 %30
  %32 = vset.pattern.permute.xlu0 0
  %33 = vperm.xlu0 %32, %v12
  %v34 = vpop.permute.xlu0 %33
  %35 = vset.pattern.permute.xlu0 0
  %36 = vperm.xlu0 %35, %v13
  %v37 = vpop.permute.xlu0 %36
  %38 = vset.pattern.permute.xlu0 0
  %39 = vperm.xlu0 %38, %v14
  %v40 = vpop.permute.xlu0 %39
  %41 = vset.pattern.permute.xlu0 0
  %42 = vperm.xlu0 %41, %v15
  %v43 = vpop.permute.xlu0 %42
  %44 = vset.pattern.permute.xlu0 0
  %45 = vperm.xlu0 %44, %v16
  %v46 = vpop.permute.xlu0 %45
  %47 = vset.pattern.permute.xlu0 0
  %48 = vperm.xlu0 %47, %v17
  %v49 = vpop.permute.xlu0 %48
  %50 = vset.pattern.permute.xlu0 0
  %51 = vperm.xlu0 %50, %v18
  %v52 = vpop.permute.xlu0 %51
  %53 = vset.pattern.permute.xlu0 0
  %54 = vperm.xlu0 %53, %v19
  %v55 = vpop.permute.xlu0 %54
  %56 = vset.pattern.permute.xlu0 0
  %57 = vperm.xlu0 %56, %v20
  %v58 = vpop.permute.xlu0 %57
  %59 = vset.pattern.permute.xlu0 0
  %60 = vperm.xlu0 %59, %v21
  %v61 = vpop.permute.xlu0 %60
  %62 = vset.pattern.permute.xlu0 0
  %63 = vperm.xlu0 %62, %v22
  %v64 = vpop.permute.xlu0 %63
  %65 = vset.pattern.permute.xlu0 0
  %66 = vperm.xlu0 %65, %v23
  %v67 = vpop.permute.xlu0 %66
  %68 = vset.pattern.permute.xlu0 0
  %69 = vperm.xlu0 %68, %v24
  %v70 = vpop.permute.xlu0 %69
  %71 = vset.pattern.permute.xlu0 0
  %72 = vperm.xlu0 %71, %v25
  %v73 = vpop.permute.xlu0 %72
  %74 = vset.pattern.permute.xlu0 0
  %75 = vperm.xlu0 %74, %v26
  %v76 = vpop.permute.xlu0 %75
  %vm77 = vcmp.eq.s32.totalorder %v28, %v31
  %vm78 = vcmp.eq.s32.totalorder %v28, %v34
  %vm79 = vcmp.eq.s32.totalorder %v28, %v37
  %vm80 = vcmp.eq.s32.totalorder %v28, %v40
  %vm81 = vcmp.eq.s32.totalorder %v28, %v43
  %vm82 = vcmp.eq.s32.totalorder %v28, %v46
  %vm83 = vcmp.eq.s32.totalorder %v28, %v49
  %vm84 = vcmp.eq.s32.totalorder %v28, %v52
  %vm85 = vcmp.eq.s32.totalorder %v28, %v55
  %vm86 = vcmp.eq.s32.totalorder %v28, %v58
  %vm87 = vcmp.eq.s32.totalorder %v28, %v61
  %vm88 = vcmp.eq.s32.totalorder %v28, %v64
  %vm89 = vcmp.eq.s32.totalorder %v28, %v67
  %vm90 = vcmp.eq.s32.totalorder %v28, %v70
  %vm91 = vcmp.eq.s32.totalorder %v28, %v73
  %vm92 = vcmp.eq.s32.totalorder %v28, %v76
  %v93 = vsel %vm77, 1, 0
  %v94 = vsel %vm78, 1, 0
  %v95 = vsel %vm79, 1, 0
  %v96 = vsel %vm80, 1, 0
  %v97 = vsel %vm81, 1, 0
  %v98 = vsel %vm82, 1, 0
  %v99 = vsel %vm83, 1, 0
  %v100 = vsel %vm84, 1, 0
  %v101 = vsel %vm85, 1, 0
  %v102 = vsel %vm86, 1, 0
  %v103 = vsel %vm87, 1, 0
  %v104 = vsel %vm88, 1, 0
  %v105 = vsel %vm89, 1, 0
  %v106 = vsel %vm90, 1, 0
  %v107 = vsel %vm91, 1, 0
  %v108 = vsel %vm92, 1, 0
  %v109 = vadd.s32 %v11, 32
  %v110 = vadd.s32 %v12, 32
  %v111 = vadd.s32 %v13, 32
  %v112 = vadd.s32 %v14, 32
  %v113 = vadd.s32 %v15, 32
  %v114 = vadd.s32 %v16, 32
  %v115 = vadd.s32 %v17, 32
  %v116 = vadd.s32 %v18, 32
  %v117 = vadd.s32 %v19, 32
  %v118 = vadd.s32 %v20, 32
  %v119 = vadd.s32 %v21, 32
  %v120 = vadd.s32 %v22, 32
  %v121 = vadd.s32 %v23, 32
  %v122 = vadd.s32 %v24, 32
  %v123 = vadd.s32 %v25, 32
  %v124 = vadd.s32 %v26, 32
  %125 = vset.pattern.permute.xlu0 1
  %126 = vperm.xlu0 %125, %v109
  %v127 = vpop.permute.xlu0 %126
  %128 = vset.pattern.permute.xlu0 1
  %129 = vperm.xlu0 %128, %v110
  %v130 = vpop.permute.xlu0 %129
  %131 = vset.pattern.permute.xlu0 1
  %132 = vperm.xlu0 %131, %v111
  %v133 = vpop.permute.xlu0 %132
  %134 = vset.pattern.permute.xlu0 1
  %135 = vperm.xlu0 %134, %v112
  %v136 = vpop.permute.xlu0 %135
  %137 = vset.pattern.permute.xlu0 1
  %138 = vperm.xlu0 %137, %v113
  %v139 = vpop.permute.xlu0 %138
  %140 = vset.pattern.permute.xlu0 1
  %141 = vperm.xlu0 %140, %v114
  %v142 = vpop.permute.xlu0 %141
  %143 = vset.pattern.permute.xlu0 1
  %144 = vperm.xlu0 %143, %v115
  %v145 = vpop.permute.xlu0 %144
  %146 = vset.pattern.permute.xlu0 1
  %147 = vperm.xlu0 %146, %v116
  %v148 = vpop.permute.xlu0 %147
  %149 = vset.pattern.permute.xlu0 1
  %150 = vperm.xlu0 %149, %v117
  %v151 = vpop.permute.xlu0 %150
  %152 = vset.pattern.permute.xlu0 1
  %153 = vperm.xlu0 %152, %v118
  %v154 = vpop.permute.xlu0 %153
  %155 = vset.pattern.permute.xlu0 1
  %156 = vperm.xlu0 %155, %v119
  %v157 = vpop.permute.xlu0 %156
  %158 = vset.pattern.permute.xlu0 1
  %159 = vperm.xlu0 %158, %v120
  %v160 = vpop.permute.xlu0 %159
  %161 = vset.pattern.permute.xlu0 1
  %162 = vperm.xlu0 %161, %v121
  %v163 = vpop.permute.xlu0 %162
  %164 = vset.pattern.permute.xlu0 1
  %165 = vperm.xlu0 %164, %v122
  %v166 = vpop.permute.xlu0 %165
  %167 = vset.pattern.permute.xlu0 1
  %168 = vperm.xlu0 %167, %v123
  %v169 = vpop.permute.xlu0 %168
  %170 = vset.pattern.permute.xlu0 1
  %171 = vperm.xlu0 %170, %v124
  %v172 = vpop.permute.xlu0 %171
  %vm173 = vcmp.eq.s32.totalorder %v28, %v127
  %vm174 = vcmp.eq.s32.totalorder %v28, %v130
  %vm175 = vcmp.eq.s32.totalorder %v28, %v133
  %vm176 = vcmp.eq.s32.totalorder %v28, %v136
  %vm177 = vcmp.eq.s32.totalorder %v28, %v139
  %vm178 = vcmp.eq.s32.totalorder %v28, %v142
  %vm179 = vcmp.eq.s32.totalorder %v28, %v145
  %vm180 = vcmp.eq.s32.totalorder %v28, %v148
  %vm181 = vcmp.eq.s32.totalorder %v28, %v151
  %vm182 = vcmp.eq.s32.totalorder %v28, %v154
  %vm183 = vcmp.eq.s32.totalorder %v28, %v157
  %vm184 = vcmp.eq.s32.totalorder %v28, %v160
  %vm185 = vcmp.eq.s32.totalorder %v28, %v163
  %vm186 = vcmp.eq.s32.totalorder %v28, %v166
  %vm187 = vcmp.eq.s32.totalorder %v28, %v169
  %vm188 = vcmp.eq.s32.totalorder %v28, %v172
  %v189 = vsel %vm173, 1, 0
  %v190 = vsel %vm174, 1, 0
  %v191 = vsel %vm175, 1, 0
  %v192 = vsel %vm176, 1, 0
  %v193 = vsel %vm177, 1, 0
  %v194 = vsel %vm178, 1, 0
  %v195 = vsel %vm179, 1, 0
  %v196 = vsel %vm180, 1, 0
  %v197 = vsel %vm181, 1, 0
  %v198 = vsel %vm182, 1, 0
  %v199 = vsel %vm183, 1, 0
  %v200 = vsel %vm184, 1, 0
  %v201 = vsel %vm185, 1, 0
  %v202 = vsel %vm186, 1, 0
  %v203 = vsel %vm187, 1, 0
  %v204 = vsel %vm188, 1, 0
  %v205 = vadd.s32 %v93, %v189
  %v206 = vadd.s32 %v94, %v190
  %v207 = vadd.s32 %v95, %v191
  %v208 = vadd.s32 %v96, %v192
  %v209 = vadd.s32 %v97, %v193
  %v210 = vadd.s32 %v98, %v194
  %v211 = vadd.s32 %v99, %v195
  %v212 = vadd.s32 %v100, %v196
  %v213 = vadd.s32 %v101, %v197
  %v214 = vadd.s32 %v102, %v198
  %v215 = vadd.s32 %v103, %v199
  %v216 = vadd.s32 %v104, %v200
  %v217 = vadd.s32 %v105, %v201
  %v218 = vadd.s32 %v106, %v202
  %v219 = vadd.s32 %v107, %v203
  %v220 = vadd.s32 %v108, %v204
  %v221 = vadd.s32 %v11, 64
  %v222 = vadd.s32 %v12, 64
  %v223 = vadd.s32 %v13, 64
  %v224 = vadd.s32 %v14, 64
  %v225 = vadd.s32 %v15, 64
  %v226 = vadd.s32 %v16, 64
  %v227 = vadd.s32 %v17, 64
  %v228 = vadd.s32 %v18, 64
  %v229 = vadd.s32 %v19, 64
  %v230 = vadd.s32 %v20, 64
  %v231 = vadd.s32 %v21, 64
  %v232 = vadd.s32 %v22, 64
  %v233 = vadd.s32 %v23, 64
  %v234 = vadd.s32 %v24, 64
  %v235 = vadd.s32 %v25, 64
  %v236 = vadd.s32 %v26, 64
  %237 = vset.pattern.permute.xlu0 2
  %238 = vperm.xlu0 %237, %v221
  %v239 = vpop.permute.xlu0 %238
  %240 = vset.pattern.permute.xlu0 2
  %241 = vperm.xlu0 %240, %v222
  %v242 = vpop.permute.xlu0 %241
  %243 = vset.pattern.permute.xlu0 2
  %244 = vperm.xlu0 %243, %v223
  %v245 = vpop.permute.xlu0 %244
  %246 = vset.pattern.permute.xlu0 2
  %247 = vperm.xlu0 %246, %v224
  %v248 = vpop.permute.xlu0 %247
  %249 = vset.pattern.permute.xlu0 2
  %250 = vperm.xlu0 %249, %v225
  %v251 = vpop.permute.xlu0 %250
  %252 = vset.pattern.permute.xlu0 2
  %253 = vperm.xlu0 %252, %v226
  %v254 = vpop.permute.xlu0 %253
  %255 = vset.pattern.permute.xlu0 2
  %256 = vperm.xlu0 %255, %v227
  %v257 = vpop.permute.xlu0 %256
  %258 = vset.pattern.permute.xlu0 2
  %259 = vperm.xlu0 %258, %v228
  %v260 = vpop.permute.xlu0 %259
  %261 = vset.pattern.permute.xlu0 2
  %262 = vperm.xlu0 %261, %v229
  %v263 = vpop.permute.xlu0 %262
  %264 = vset.pattern.permute.xlu0 2
  %265 = vperm.xlu0 %264, %v230
  %v266 = vpop.permute.xlu0 %265
  %267 = vset.pattern.permute.xlu0 2
  %268 = vperm.xlu0 %267, %v231
  %v269 = vpop.permute.xlu0 %268
  %270 = vset.pattern.permute.xlu0 2
  %271 = vperm.xlu0 %270, %v232
  %v272 = vpop.permute.xlu0 %271
  %273 = vset.pattern.permute.xlu0 2
  %274 = vperm.xlu0 %273, %v233
  %v275 = vpop.permute.xlu0 %274
  %276 = vset.pattern.permute.xlu0 2
  %277 = vperm.xlu0 %276, %v234
  %v278 = vpop.permute.xlu0 %277
  %279 = vset.pattern.permute.xlu0 2
  %280 = vperm.xlu0 %279, %v235
  %v281 = vpop.permute.xlu0 %280
  %282 = vset.pattern.permute.xlu0 2
  %283 = vperm.xlu0 %282, %v236
  %v284 = vpop.permute.xlu0 %283
  %vm285 = vcmp.eq.s32.totalorder %v28, %v239
  %vm286 = vcmp.eq.s32.totalorder %v28, %v242
  %vm287 = vcmp.eq.s32.totalorder %v28, %v245
  %vm288 = vcmp.eq.s32.totalorder %v28, %v248
  %vm289 = vcmp.eq.s32.totalorder %v28, %v251
  %vm290 = vcmp.eq.s32.totalorder %v28, %v254
  %vm291 = vcmp.eq.s32.totalorder %v28, %v257
  %vm292 = vcmp.eq.s32.totalorder %v28, %v260
  %vm293 = vcmp.eq.s32.totalorder %v28, %v263
  %vm294 = vcmp.eq.s32.totalorder %v28, %v266
  %vm295 = vcmp.eq.s32.totalorder %v28, %v269
  %vm296 = vcmp.eq.s32.totalorder %v28, %v272
  %vm297 = vcmp.eq.s32.totalorder %v28, %v275
  %vm298 = vcmp.eq.s32.totalorder %v28, %v278
  %vm299 = vcmp.eq.s32.totalorder %v28, %v281
  %vm300 = vcmp.eq.s32.totalorder %v28, %v284
  %v301 = vsel %vm285, 1, 0
  %v302 = vsel %vm286, 1, 0
  %v303 = vsel %vm287, 1, 0
  %v304 = vsel %vm288, 1, 0
  %v305 = vsel %vm289, 1, 0
  %v306 = vsel %vm290, 1, 0
  %v307 = vsel %vm291, 1, 0
  %v308 = vsel %vm292, 1, 0
  %v309 = vsel %vm293, 1, 0
  %v310 = vsel %vm294, 1, 0
  %v311 = vsel %vm295, 1, 0
  %v312 = vsel %vm296, 1, 0
  %v313 = vsel %vm297, 1, 0
  %v314 = vsel %vm298, 1, 0
  %v315 = vsel %vm299, 1, 0
  %v316 = vsel %vm300, 1, 0
  %v317 = vadd.s32 %v205, %v301
  %v318 = vadd.s32 %v206, %v302
  %v319 = vadd.s32 %v207, %v303
  %v320 = vadd.s32 %v208, %v304
  %v321 = vadd.s32 %v209, %v305
  %v322 = vadd.s32 %v210, %v306
  %v323 = vadd.s32 %v211, %v307
  %v324 = vadd.s32 %v212, %v308
  %v325 = vadd.s32 %v213, %v309
  %v326 = vadd.s32 %v214, %v310
  %v327 = vadd.s32 %v215, %v311
  %v328 = vadd.s32 %v216, %v312
  %v329 = vadd.s32 %v217, %v313
  %v330 = vadd.s32 %v218, %v314
  %v331 = vadd.s32 %v219, %v315
  %v332 = vadd.s32 %v220, %v316
  %v333 = vadd.s32 %v11, 96
  %v334 = vadd.s32 %v12, 96
  %v335 = vadd.s32 %v13, 96
  %v336 = vadd.s32 %v14, 96
  %v337 = vadd.s32 %v15, 96
  %v338 = vadd.s32 %v16, 96
  %v339 = vadd.s32 %v17, 96
  %v340 = vadd.s32 %v18, 96
  %v341 = vadd.s32 %v19, 96
  %v342 = vadd.s32 %v20, 96
  %v343 = vadd.s32 %v21, 96
  %v344 = vadd.s32 %v22, 96
  %v345 = vadd.s32 %v23, 96
  %v346 = vadd.s32 %v24, 96
  %v347 = vadd.s32 %v25, 96
  %v348 = vadd.s32 %v26, 96
  %349 = vset.pattern.permute.xlu0 3
  %350 = vperm.xlu0 %349, %v333
  %v351 = vpop.permute.xlu0 %350
  %352 = vset.pattern.permute.xlu0 3
  %353 = vperm.xlu0 %352, %v334
  %v354 = vpop.permute.xlu0 %353
  %355 = vset.pattern.permute.xlu0 3
  %356 = vperm.xlu0 %355, %v335
  %v357 = vpop.permute.xlu0 %356
  %358 = vset.pattern.permute.xlu0 3
  %359 = vperm.xlu0 %358, %v336
  %v360 = vpop.permute.xlu0 %359
  %361 = vset.pattern.permute.xlu0 3
  %362 = vperm.xlu0 %361, %v337
  %v363 = vpop.permute.xlu0 %362
  %364 = vset.pattern.permute.xlu0 3
  %365 = vperm.xlu0 %364, %v338
  %v366 = vpop.permute.xlu0 %365
  %367 = vset.pattern.permute.xlu0 3
  %368 = vperm.xlu0 %367, %v339
  %v369 = vpop.permute.xlu0 %368
  %370 = vset.pattern.permute.xlu0 3
  %371 = vperm.xlu0 %370, %v340
  %v372 = vpop.permute.xlu0 %371
  %373 = vset.pattern.permute.xlu0 3
  %374 = vperm.xlu0 %373, %v341
  %v375 = vpop.permute.xlu0 %374
  %376 = vset.pattern.permute.xlu0 3
  %377 = vperm.xlu0 %376, %v342
  %v378 = vpop.permute.xlu0 %377
  %379 = vset.pattern.permute.xlu0 3
  %380 = vperm.xlu0 %379, %v343
  %v381 = vpop.permute.xlu0 %380
  %382 = vset.pattern.permute.xlu0 3
  %383 = vperm.xlu0 %382, %v344
  %v384 = vpop.permute.xlu0 %383
  %385 = vset.pattern.permute.xlu0 3
  %386 = vperm.xlu0 %385, %v345
  %v387 = vpop.permute.xlu0 %386
  %388 = vset.pattern.permute.xlu0 3
  %389 = vperm.xlu0 %388, %v346
  %v390 = vpop.permute.xlu0 %389
  %391 = vset.pattern.permute.xlu0 3
  %392 = vperm.xlu0 %391, %v347
  %v393 = vpop.permute.xlu0 %392
  %394 = vset.pattern.permute.xlu0 3
  %395 = vperm.xlu0 %394, %v348
  %v396 = vpop.permute.xlu0 %395
  %vm397 = vcmp.eq.s32.totalorder %v28, %v351
  %vm398 = vcmp.eq.s32.totalorder %v28, %v354
  %vm399 = vcmp.eq.s32.totalorder %v28, %v357
  %vm400 = vcmp.eq.s32.totalorder %v28, %v360
  %vm401 = vcmp.eq.s32.totalorder %v28, %v363
  %vm402 = vcmp.eq.s32.totalorder %v28, %v366
  %vm403 = vcmp.eq.s32.totalorder %v28, %v369
  %vm404 = vcmp.eq.s32.totalorder %v28, %v372
  %vm405 = vcmp.eq.s32.totalorder %v28, %v375
  %vm406 = vcmp.eq.s32.totalorder %v28, %v378
  %vm407 = vcmp.eq.s32.totalorder %v28, %v381
  %vm408 = vcmp.eq.s32.totalorder %v28, %v384
  %vm409 = vcmp.eq.s32.totalorder %v28, %v387
  %vm410 = vcmp.eq.s32.totalorder %v28, %v390
  %vm411 = vcmp.eq.s32.totalorder %v28, %v393
  %vm412 = vcmp.eq.s32.totalorder %v28, %v396
  %v413 = vsel %vm397, 1, 0
  %v414 = vsel %vm398, 1, 0
  %v415 = vsel %vm399, 1, 0
  %v416 = vsel %vm400, 1, 0
  %v417 = vsel %vm401, 1, 0
  %v418 = vsel %vm402, 1, 0
  %v419 = vsel %vm403, 1, 0
  %v420 = vsel %vm404, 1, 0
  %v421 = vsel %vm405, 1, 0
  %v422 = vsel %vm406, 1, 0
  %v423 = vsel %vm407, 1, 0
  %v424 = vsel %vm408, 1, 0
  %v425 = vsel %vm409, 1, 0
  %v426 = vsel %vm410, 1, 0
  %v427 = vsel %vm411, 1, 0
  %v428 = vsel %vm412, 1, 0
  %v429 = vadd.s32 %v317, %v413
  %v430 = vadd.s32 %v318, %v414
  %v431 = vadd.s32 %v319, %v415
  %v432 = vadd.s32 %v320, %v416
  %v433 = vadd.s32 %v321, %v417
  %v434 = vadd.s32 %v322, %v418
  %v435 = vadd.s32 %v323, %v419
  %v436 = vadd.s32 %v324, %v420
  %v437 = vadd.s32 %v325, %v421
  %v438 = vadd.s32 %v326, %v422
  %v439 = vadd.s32 %v327, %v423
  %v440 = vadd.s32 %v328, %v424
  %v441 = vadd.s32 %v329, %v425
  %v442 = vadd.s32 %v330, %v426
  %v443 = vadd.s32 %v331, %v427
  %v444 = vadd.s32 %v332, %v428
  %v445 = vcvt.s32.f32 %v429
  %v446 = vcvt.s32.f32 %v430
  %v447 = vcvt.s32.f32 %v431
  %v448 = vcvt.s32.f32 %v432
  %v449 = vcvt.s32.f32 %v433
  %v450 = vcvt.s32.f32 %v434
  %v451 = vcvt.s32.f32 %v435
  %v452 = vcvt.s32.f32 %v436
  %v453 = vcvt.s32.f32 %v437
  %v454 = vcvt.s32.f32 %v438
  %v455 = vcvt.s32.f32 %v439
  %v456 = vcvt.s32.f32 %v440
  %v457 = vcvt.s32.f32 %v441
  %v458 = vcvt.s32.f32 %v442
  %v459 = vcvt.s32.f32 %v443
  %v460 = vcvt.s32.f32 %v444
  %v461 = vld [vmem:[%s1] sm:$0xff]
  %v462 = vld [vmem:[%s1 + $0x8] sm:$0xff]
  %v463 = vld [vmem:[%s1 + $0x10] sm:$0xff]
  %v464 = vld [vmem:[%s1 + $0x18] sm:$0xff]
  %v465 = vld [vmem:[%s1 + $0x20] sm:$0xff]
  %v466 = vld [vmem:[%s1 + $0x28] sm:$0xff]
  %v467 = vld [vmem:[%s1 + $0x30] sm:$0xff]
  %v468 = vld [vmem:[%s1 + $0x38] sm:$0xff]
  %v469 = vld [vmem:[%s1 + $0x40] sm:$0xff]
  %v470 = vld [vmem:[%s1 + $0x48] sm:$0xff]
  %v471 = vld [vmem:[%s1 + $0x50] sm:$0xff]
  %v472 = vld [vmem:[%s1 + $0x58] sm:$0xff]
  %v473 = vld [vmem:[%s1 + $0x60] sm:$0xff]
  %v474 = vld [vmem:[%s1 + $0x68] sm:$0xff]
  %v475 = vld [vmem:[%s1 + $0x70] sm:$0xff]
  %v476 = vld [vmem:[%s1 + $0x78] sm:$0xff]
  %477 = vmatpush.msra.mxu0 %v476
  %478 = vmatpush.msra.mxu0 %v475
  %479 = vmatpush.msra.mxu0 %v474
  %480 = vmatpush.msra.mxu0 %v473
  %481 = vmatpush.msra.mxu0 %v472
  %482 = vmatpush.msra.mxu0 %v471
  %483 = vmatpush.msra.mxu0 %v470
  %484 = vmatpush.msra.mxu0 %v469
  %485 = vmatpush.msra.mxu0 %v468
  %486 = vmatpush.msra.mxu0 %v467
  %487 = vmatpush.msra.mxu0 %v466
  %488 = vmatpush.msra.mxu0 %v465
  %489 = vmatpush.msra.mxu0 %v464
  %490 = vmatpush.msra.mxu0 %v463
  %491 = vmatpush.msra.mxu0 %v462
  %492 = vmatpush.msra.mxu0 %v461
  %493 = vmatmul.f32.gmra.mxu0 %v445
  %v494 = vpop.f32.mrf.mxu0
  %v495 = vadd.f32 0.0, %v494
  %496 = vmatmul.f32.gmra.mxu0 %v446
  %v497 = vpop.f32.mrf.mxu0
  %v498 = vadd.f32 0.0, %v497
  %499 = vmatmul.f32.gmra.mxu0 %v447
  %v500 = vpop.f32.mrf.mxu0
  %v501 = vadd.f32 0.0, %v500
  %502 = vmatmul.f32.gmra.mxu0 %v448
  %v503 = vpop.f32.mrf.mxu0
  %v504 = vadd.f32 0.0, %v503
  %505 = vmatmul.f32.gmra.mxu0 %v449
  %v506 = vpop.f32.mrf.mxu0
  %v507 = vadd.f32 0.0, %v506
  %508 = vmatmul.f32.gmra.mxu0 %v450
  %v509 = vpop.f32.mrf.mxu0
  %v510 = vadd.f32 0.0, %v509
  %511 = vmatmul.f32.gmra.mxu0 %v451
  %v512 = vpop.f32.mrf.mxu0
  %v513 = vadd.f32 0.0, %v512
  %514 = vmatmul.f32.gmra.mxu0 %v452
  %v515 = vpop.f32.mrf.mxu0
  %v516 = vadd.f32 0.0, %v515
  %517 = vmatmul.f32.gmra.mxu0 %v453
  %v518 = vpop.f32.mrf.mxu0
  %v519 = vadd.f32 0.0, %v518
  %520 = vmatmul.f32.gmra.mxu0 %v454
  %v521 = vpop.f32.mrf.mxu0
  %v522 = vadd.f32 0.0, %v521
  %523 = vmatmul.f32.gmra.mxu0 %v455
  %v524 = vpop.f32.mrf.mxu0
  %v525 = vadd.f32 0.0, %v524
  %526 = vmatmul.f32.gmra.mxu0 %v456
  %v527 = vpop.f32.mrf.mxu0
  %v528 = vadd.f32 0.0, %v527
  %529 = vmatmul.f32.gmra.mxu0 %v457
  %v530 = vpop.f32.mrf.mxu0
  %v531 = vadd.f32 0.0, %v530
  %532 = vmatmul.f32.gmra.mxu0 %v458
  %v533 = vpop.f32.mrf.mxu0
  %v534 = vadd.f32 0.0, %v533
  %535 = vmatmul.f32.gmra.mxu0 %v459
  %v536 = vpop.f32.mrf.mxu0
  %v537 = vadd.f32 0.0, %v536
  %538 = vmatmul.f32.gmra.mxu0 %v460
  %v539 = vpop.f32.mrf.mxu0
  %v540 = vadd.f32 0.0, %v539
  %541 = vdwg.mxu0
  %542 = vst [vmem:[%s2] sm:$0xff] %v495
  %543 = vst [vmem:[%s2 + $0x8] sm:$0xff] %v498
  %544 = vst [vmem:[%s2 + $0x10] sm:$0xff] %v501
  %545 = vst [vmem:[%s2 + $0x18] sm:$0xff] %v504
  %546 = vst [vmem:[%s2 + $0x20] sm:$0xff] %v507
  %547 = vst [vmem:[%s2 + $0x28] sm:$0xff] %v510
  %548 = vst [vmem:[%s2 + $0x30] sm:$0xff] %v513
  %549 = vst [vmem:[%s2 + $0x38] sm:$0xff] %v516
  %550 = vst [vmem:[%s2 + $0x40] sm:$0xff] %v519
  %551 = vst [vmem:[%s2 + $0x48] sm:$0xff] %v522
  %552 = vst [vmem:[%s2 + $0x50] sm:$0xff] %v525
  %553 = vst [vmem:[%s2 + $0x58] sm:$0xff] %v528
  %554 = vst [vmem:[%s2 + $0x60] sm:$0xff] %v531
  %555 = vst [vmem:[%s2 + $0x68] sm:$0xff] %v534
  %556 = vst [vmem:[%s2 + $0x70] sm:$0xff] %v537
  %557 = vst [vmem:[%s2 + $0x78] sm:$0xff] %v540
  // Predicated region
  $region10: #{pq_embedding.1} parent=0 // pred_check
    _
  $region11: #{pq_embedding.1} parent=0 // pred_check_branch
    %559 = sbr.rel (0) target = $region13
  $region12: #{pq_embedding.1} parent=0 // pred_region
    _
  $region13: #{pq_embedding.1} parent=0 // pred_fallthru
    _
  // Predicated region
  $region14: #{pq_embedding.1} parent=0 // pred_check
    _
  $region15: #{pq_embedding.1} parent=0 // pred_check_branch
    %561 = sbr.rel (0) target = $region17
  $region16: #{pq_embedding.1} parent=0 // pred_region
    _
  $region17: #{pq_embedding.1} parent=0 // pred_fallthru
    _

</llo_original>
